<compile_context>
chip_gen: v6e
topology: v6e:2x2x1
jax: 0.10.0
libtpu: 0.0.40
codegen_flags: <defaults>
</compile_context>

<pallas_src>
import jax
import jax.numpy as jnp
from jax.experimental import pallas as pl
from jax.experimental.pallas import tpu as pltpu

_LANES = 512          # lane-dense last dim (multiple of 128)
_MAX_TILE_ROWS = 512  # 512 rows x 512 lanes x 4 B = 1 MiB per block (f32)


def _relu6_div6_kernel(x_ref, o_ref):
    x = x_ref[...]
    v1 = jnp.maximum(x, 0.0)        # clamp_min(x, 0)
    v2 = jnp.minimum(v1, 6.0)       # clamp_max(v1, 6)
    o_ref[...] = v2 * (1.0 / 6.0)   # v2 / 6


def relu6_div6(x):
    """Elementwise clamp(x, 0, 6) / 6 for any-shaped float array."""
    orig_shape = x.shape
    total = x.size

    # Flatten to a lane-dense slab; pad so rows is a multiple of 8.
    chunk = 8 * _LANES
    padded_total = pl.cdiv(total, chunk) * chunk
    flat = x.reshape(-1)
    if padded_total != total:
        flat = jnp.pad(flat, (0, padded_total - total))
    rows = padded_total // _LANES
    x2d = flat.reshape(rows, _LANES)

    # ~1 MiB blocks; rows and _MAX_TILE_ROWS are both multiples of 8.
    tile_rows = min(rows, _MAX_TILE_ROWS)
    grid = (pl.cdiv(rows, tile_rows),)

    out2d = pl.pallas_call(
        _relu6_div6_kernel,
        out_shape=jax.ShapeDtypeStruct((rows, _LANES), x.dtype),
        grid_spec=pltpu.PrefetchScalarGridSpec(
            num_scalar_prefetch=0,
            grid=grid,
            in_specs=[pl.BlockSpec((tile_rows, _LANES), lambda i: (i, 0))],
            out_specs=pl.BlockSpec((tile_rows, _LANES), lambda i: (i, 0)),
        ),
        compiler_params=pltpu.CompilerParams(
            dimension_semantics=("parallel",),
        ),
    )(x2d)

    out_flat = out2d.reshape(-1)
    if padded_total != total:
        out_flat = out_flat[:total]
    return out_flat.reshape(orig_shape)


if __name__ == "__main__":
    key = jax.random.PRNGKey(0)
    # Same shape convention as the PyTorch module's example input.
    x1 = jax.random.normal(key, (1, 3, 64, 64), dtype=jnp.float32)

    out = jax.block_until_ready(relu6_div6(x1))

    # Reference check in plain JAX.
    ref = jnp.minimum(jnp.maximum(x1, 0.0), 6.0) / 6.0
    assert out.shape == x1.shape
    assert jnp.allclose(out, ref, atol=1e-6, rtol=1e-6)

    print("KERNEL_OK")
</pallas_src>

<mosaic_0001>
module attributes {stable_mosaic.version = 11 : i64} {
  func.func @_relu6_div6_kernel(%arg0: i32, %arg1: memref<24x512xf32, #tpu.memory_space<vmem>>, %arg2: memref<24x512xf32, #tpu.memory_space<vmem>>) attributes {dimension_semantics = [#tpu.dimension_semantics<parallel>], iteration_bounds = array<i64: 1>, scalar_prefetch = 0 : i64, scratch_operands = 0 : i64, tpu.core_type = #tpu.core_type<tc>, window_params = [{transform_indices = @transform_0, window_bounds = array<i64: 24, 512>}, {transform_indices = @transform_1, window_bounds = array<i64: 24, 512>}]} {
    %c0 = arith.constant 0 : index
    %c0_0 = arith.constant 0 : index
    %0 = vector.load %arg1[%c0, %c0_0] : memref<24x512xf32, #tpu.memory_space<vmem>>, vector<24x512xf32>
    %cst = arith.constant 0.000000e+00 : f32
    %1 = vector.broadcast %cst : f32 to vector<24x512xf32>
    %2 = arith.maximumf %0, %1 : vector<24x512xf32>
    %cst_1 = arith.constant 6.000000e+00 : f32
    %3 = vector.broadcast %cst_1 : f32 to vector<24x512xf32>
    %4 = arith.minimumf %2, %3 : vector<24x512xf32>
    %cst_2 = arith.constant 0.166666672 : f32
    %5 = vector.broadcast %cst_2 : f32 to vector<24x512xf32>
    %6 = arith.mulf %4, %5 : vector<24x512xf32>
    %c0_3 = arith.constant 0 : index
    %c0_4 = arith.constant 0 : index
    %7 = vector.load %arg2[%c0_3, %c0_4] : memref<24x512xf32, #tpu.memory_space<vmem>>, vector<24x512xf32>
    tpu.vector_store %arg2[%c0_3, %c0_4], %6 {strides = array<i32>} : memref<24x512xf32, #tpu.memory_space<vmem>>, vector<24x512xf32>,
    return
  }
  func.func @transform_0(%arg0: i32) -> (i32, i32) {
    %c0_i32 = arith.constant 0 : i32
    %c0_i32_0 = arith.constant 0 : i32
    return %arg0, %c0_i32 : i32, i32
  }
  func.func @transform_1(%arg0: i32) -> (i32, i32) {
    %c0_i32 = arith.constant 0 : i32
    %c0_i32_0 = arith.constant 0 : i32
    return %arg0, %c0_i32 : i32, i32
  }
}

</mosaic_0001>

<llo_original>
// kernel: tpu_custom_call.1
$region0: #{tpu_custom_call.1}
  #allocation0 [shape = 'u32[]', space=smem, size = 0x4, offset = 0x4, fixed_abs, tag = 'smem constant byte address 0x4 - core index']
  #allocation1 [shape = 'u32[144,128]{1,0:T(1,128)}', space=vmem, size = 0x12000, scoped, tag = 'internal scratch']
  %s0 = inlined_call_operand.hbm [shape: f32[24,512], index: 0, kind: input, shape index: {}]
  %s1 = inlined_call_operand.hbm [shape: f32[24,512], index: 1, kind: output, shape index: {}]
  %s2 = sld [smem:[#allocation0]]
  $region18: #{tpu_custom_call.1} parent=0
    _
  %s4 = ssub.s32 1, %s2
  %s5 = scalar_select 0, %s4, %s2
  $region1: #{tpu_custom_call.1} parent=0
    #allocation2 [shape = 'u8[49152]{0}', space=vmem, size = 0xc000, scoped, tag = 'input window, operand 0, single buffered']
    #allocation3 [shape = 's32[1]{0}', space=sflag, size = 0x4, scoped, tag = 'scoped memory for tpu_custom_call.1']
    #allocation4 [shape = 's32[1]{0}', space=sflag, size = 0x4, scoped, tag = 'scoped memory for tpu_custom_call.1']
    #allocation5 [shape = 'u8[49152]{0}', space=vmem, size = 0xc000, scoped, tag = 'output window, operand 0, single buffered']
    %6 = vsyncpa [#allocation3], 0
    %7 = vsyncpa [#allocation4], 0
    // Predicated region
    $region2: #{tpu_custom_call.1} parent=1 // pred_check
      _
    $region3: #{tpu_custom_call.1} parent=1 // pred_check_branch
      %9 = sbr.rel (0) target = $region5
    $region4: #{tpu_custom_call.1} parent=1 // pred_region
      %s11 = ssub.s32 1536, 1536
      %12 = vsyncadd [#allocation3], %s11
      %s13 = sshll.u32 [#allocation2], 4
      %s14 = int_to_ptr.vmem [resolvable:$true] %s13
      %19 = dma.hbm_to_vmem [thread:$0]  %s0, 1536, %s14, [#allocation3], 512, 512, 32
    $region5: #{tpu_custom_call.1} parent=1 // pred_fallthru
      _
    // Predicated region
    $region6: #{tpu_custom_call.1} parent=1 // pred_check
      _
    $region7: #{tpu_custom_call.1} parent=1 // pred_check_branch
      %21 = sbr.rel (0) target = $region9
    $region8: #{tpu_custom_call.1} parent=1 // pred_region
      %22 = dma.done [#allocation3], 1536
    $region9: #{tpu_custom_call.1} parent=1 // pred_fallthru
      _
    %v23 = vld [vmem:[#allocation2] sm:$0xff]
    %v24 = vld [vmem:[#allocation2 + $0x8] sm:$0xff]
    %v25 = vld [vmem:[#allocation2 + $0x10] sm:$0xff]
    %v26 = vld [vmem:[#allocation2 + $0x18] sm:$0xff]
    %v27 = vld [vmem:[#allocation2 + $0x20] sm:$0xff]
    %v28 = vld [vmem:[#allocation2 + $0x28] sm:$0xff]
    %v29 = vld [vmem:[#allocation2 + $0x30] sm:$0xff]
    %v30 = vld [vmem:[#allocation2 + $0x38] sm:$0xff]
    %v31 = vld [vmem:[#allocation2 + $0x40] sm:$0xff]
    %v32 = vld [vmem:[#allocation2 + $0x48] sm:$0xff]
    %v33 = vld [vmem:[#allocation2 + $0x50] sm:$0xff]
    %v34 = vld [vmem:[#allocation2 + $0x58] sm:$0xff]
    %v35 = vmax.f32 %v23, 0.0
    %v36 = vmax.f32 %v24, 0.0
    %v37 = vmax.f32 %v25, 0.0
    %v38 = vmax.f32 %v26, 0.0
    %v39 = vmax.f32 %v27, 0.0
    %v40 = vmax.f32 %v28, 0.0
    %v41 = vmax.f32 %v29, 0.0
    %v42 = vmax.f32 %v30, 0.0
    %v43 = vmax.f32 %v31, 0.0
    %v44 = vmax.f32 %v32, 0.0
    %v45 = vmax.f32 %v33, 0.0
    %v46 = vmax.f32 %v34, 0.0
    %v47 = vmin.f32 %v35, 6.0
    %v48 = vmin.f32 %v36, 6.0
    %v49 = vmin.f32 %v37, 6.0
    %v50 = vmin.f32 %v38, 6.0
    %v51 = vmin.f32 %v39, 6.0
    %v52 = vmin.f32 %v40, 6.0
    %v53 = vmin.f32 %v41, 6.0
    %v54 = vmin.f32 %v42, 6.0
    %v55 = vmin.f32 %v43, 6.0
    %v56 = vmin.f32 %v44, 6.0
    %v57 = vmin.f32 %v45, 6.0
    %v58 = vmin.f32 %v46, 6.0
    %v59 = vmul.f32 %v47, 0.16666667
    %v60 = vmul.f32 %v48, 0.16666667
    %v61 = vmul.f32 %v49, 0.16666667
    %v62 = vmul.f32 %v50, 0.16666667
    %v63 = vmul.f32 %v51, 0.16666667
    %v64 = vmul.f32 %v52, 0.16666667
    %v65 = vmul.f32 %v53, 0.16666667
    %v66 = vmul.f32 %v54, 0.16666667
    %v67 = vmul.f32 %v55, 0.16666667
    %v68 = vmul.f32 %v56, 0.16666667
    %v69 = vmul.f32 %v57, 0.16666667
    %v70 = vmul.f32 %v58, 0.16666667
    %71 = vst [vmem:[#allocation5] sm:$0xff] %v59
    %72 = vst [vmem:[#allocation5 + $0x8] sm:$0xff] %v60
    %73 = vst [vmem:[#allocation5 + $0x10] sm:$0xff] %v61
    %74 = vst [vmem:[#allocation5 + $0x18] sm:$0xff] %v62
    %75 = vst [vmem:[#allocation5 + $0x20] sm:$0xff] %v63
    %76 = vst [vmem:[#allocation5 + $0x28] sm:$0xff] %v64
    %77 = vst [vmem:[#allocation5 + $0x30] sm:$0xff] %v65
    %78 = vst [vmem:[#allocation5 + $0x38] sm:$0xff] %v66
    %79 = vst [vmem:[#allocation5 + $0x40] sm:$0xff] %v67
    %80 = vst [vmem:[#allocation5 + $0x48] sm:$0xff] %v68
    %81 = vst [vmem:[#allocation5 + $0x50] sm:$0xff] %v69
    %82 = vst [vmem:[#allocation5 + $0x58] sm:$0xff] %v70
    // Predicated region
    $region10: #{tpu_custom_call.1} parent=1 // pred_check
      _
    $region11: #{tpu_custom_call.1} parent=1 // pred_check_branch
      %84 = sbr.rel (0) target = $region13
    $region12: #{tpu_custom_call.1} parent=1 // pred_region
      %s86 = ssub.s32 1536, 1536
      %87 = vsyncadd [#allocation4], %s86
      %s88 = sshll.u32 [#allocation5], 4
      %s89 = int_to_ptr.vmem [resolvable:$true] %s88
      %94 = dma.vmem_to_hbm [thread:$0]  %s89, 1536, %s1, [#allocation4], 512, 512, 32
    $region13: #{tpu_custom_call.1} parent=1 // pred_fallthru
      _
    // Predicated region
    $region14: #{tpu_custom_call.1} parent=1 // pred_check
      _
    $region15: #{tpu_custom_call.1} parent=1 // pred_check_branch
      %96 = sbr.rel (0) target = $region17
    $region16: #{tpu_custom_call.1} parent=1 // pred_region
      %97 = dma.done [#allocation4], 1536
    $region17: #{tpu_custom_call.1} parent=1 // pred_fallthru
      _
    %98 = vsyncpa [#allocation3], 1
    %99 = vsyncpa [#allocation4], 1

</llo_original>
